<compile_context>
chip_gen: v6e
topology: v6e:2x2x1
jax: 0.10.0
libtpu: 0.0.40
codegen_flags: <defaults>
</compile_context>

<pallas_src>
import functools

import jax
import jax.numpy as jnp
from jax.experimental import pallas as pl
from jax.experimental.pallas import tpu as pltpu


# ----------------------------- config (args) -------------------------------
class Args:
    n_features = 4      # input_dim == output_dim
    hidRNN = 32         # hidden_dim  (4H = 128 = one full lane width)
    seq_len = 8
    n_layers = 2
    do = 0.0            # dropout (inference -> identity)
    batch_size = 2


# ------------------------------- kernel ------------------------------------
def _slstm_kernel(num_layers, seq_len, hidden, bpad,
                  x_ref, w_ref, b_ref, out_ref, seq_a, seq_b):
    """x_ref  : (T*BP, 4H)     bf16, time-major, batch padded to BP=8,
                               features zero-padded to 4H
       w_ref  : (2L+2, 4H, 4H) bf16 weight slab:
                [wx_0, wh_0, wx_1, wh_1, ..., w1_head, w2_head],
                every block zero-row-padded to 4H rows; g-gate columns of
                wx/wh pre-scaled by 2 (tanh-as-sigmoid trick)
       b_ref  : (8, 4H)        f32 bias slab: rows 0..L-1 = (b_ih+b_hh)_l with
                g block *2, row L = head b1 (lane-padded), row L+1 = head b2
       out_ref: (BP, 4H)       f32, rows [0,B) x lanes [0,n_features) valid
       seq_a/seq_b: (T*BP, 4H) f32 VMEM scratch (ping-pong layer outputs)
    """
    H = hidden
    T = seq_len
    BP = bpad
    seq_bufs = (seq_a, seq_b)

    h = None
    for l in range(num_layers):
        wx = w_ref[2 * l]                                  # (G, G) bf16
        wh = w_ref[2 * l + 1]                              # (G, G) bf16
        bias = b_ref[l:l + 1, :]                           # (1, G) f32

        if l == 0:
            layer_in = x_ref[...]                          # (T*BP, G) bf16
        else:
            # One bulk cast per layer (off the per-step critical path).
            layer_in = seq_bufs[(l - 1) % 2][...].astype(jnp.bfloat16)

        # Hoisted input projection: one matmul + one bias broadcast per layer
        # (instead of one of each per timestep).
        xproj = jnp.dot(layer_in, wx,
                        preferred_element_type=jnp.float32) + bias   # (T*BP, G)

        h = jnp.zeros((BP, G := 4 * H), jnp.float32)
        c = jnp.zeros((BP, G), jnp.float32)
        need_outs = (l + 1 < num_layers)
        out_buf = seq_bufs[l % 2]
        for t in range(T):
            # Only the dependent recurrence matmul stays in the loop; the
            # xproj slice is exactly one vreg (BP=8 sublanes x 128 lanes).
            pre = xproj[t * BP:(t + 1) * BP, :] + jnp.dot(
                h.astype(jnp.bfloat16), wh,
                preferred_element_type=jnp.float32)        # (BP, G) f32

            # Single sigmoid pass over the whole vreg (EUP).  Gate order is
            # PyTorch's [ i | f | g | o ]; the g columns were pre-scaled by 2
            # so tanh(pre_g) == 2*sigmoid(2*pre_g) - 1 is recovered with one
            # VPU mul+sub.  XLU rolls align f/g/o onto lanes [0,H); lanes >= H
            # hold bounded garbage that zero-padded weight rows annihilate.
            sig = jax.nn.sigmoid(pre)
            f_al = pltpu.roll(sig, shift=3 * H, axis=1)          # f -> [0,H)
            g_al = 2.0 * pltpu.roll(sig, shift=2 * H, axis=1) - 1.0  # tanh(g)
            o_al = pltpu.roll(sig, shift=H, axis=1)              # o -> [0,H)

            c = f_al * c + sig * g_al                      # i already at [0,H)
            h = o_al * jnp.tanh(c)                         # 2nd (last) EUP pass
            if need_outs:
                # Full-vreg, tile-aligned f32 store (no sublane packing).
                out_buf[t * BP:(t + 1) * BP, :] = h

    last = h                                               # == lstm_out[:, -1]

    # Regression head: Linear -> Tanh -> Linear, all 128-lane dense.
    w1 = w_ref[2 * num_layers]                             # (G, G) bf16
    w2 = w_ref[2 * num_layers + 1]                         # (G, G) bf16
    b1 = b_ref[num_layers:num_layers + 1, :]               # (1, G) f32
    b2 = b_ref[num_layers + 1:num_layers + 2, :]           # (1, G) f32

    hid = jnp.tanh(jnp.dot(last.astype(jnp.bfloat16), w1,
                           preferred_element_type=jnp.float32) + b1)
    out_ref[...] = jnp.dot(hid.astype(jnp.bfloat16), w2,
                           preferred_element_type=jnp.float32) + b2


# ------------------------------- wrapper ------------------------------------
def slstm_forward(x, packed_params, *, num_layers, seq_len, hidden, out_dim):
    B, T, F = x.shape
    G = 4 * hidden
    BP = max(8, ((B + 7) // 8) * 8)          # batch padded to 8 sublanes
    w_slab, b_slab = packed_params

    # Time-major, batch padded to BP, features zero-padded to 4H, bf16 operand.
    x_tm = jnp.transpose(x, (1, 0, 2))                       # (T, B, F)
    x_pad = jnp.zeros((T, BP, G), jnp.bfloat16).at[:, :B, :F].set(
        x_tm.astype(jnp.bfloat16)).reshape(T * BP, G)

    kernel = functools.partial(_slstm_kernel, num_layers, T, hidden, BP)
    out = pl.pallas_call(
        kernel,
        out_shape=jax.ShapeDtypeStruct((BP, G), jnp.float32),
        in_specs=[pl.BlockSpec(memory_space=pltpu.MemorySpace.VMEM)] * 3,
        out_specs=pl.BlockSpec(memory_space=pltpu.MemorySpace.VMEM),
        scratch_shapes=[pltpu.VMEM((T * BP, G), jnp.float32),
                        pltpu.VMEM((T * BP, G), jnp.float32)],
    )(x_pad, w_slab, b_slab)
    return out[:B, :out_dim]


# --------------------------- parameter init ---------------------------------
def init_params(key, args):
    """Deterministic init matching PyTorch shapes (uniform +-1/sqrt(H)).
    Weights stored pre-transposed for x @ W; LSTM biases folded (b_ih+b_hh).
    Gate column order is PyTorch's (i, f, g, o)."""
    H, F, L = args.hidRNN, args.n_features, args.n_layers
    bound = 1.0 / jnp.sqrt(jnp.float32(H))
    params = []
    for l in range(L):
        in_dim = F if l == 0 else H
        key, k1, k2, k3, k4 = jax.random.split(key, 5)
        w_ih = jax.random.uniform(k1, (4 * H, in_dim), jnp.float32, -bound, bound)
        w_hh = jax.random.uniform(k2, (4 * H, H), jnp.float32, -bound, bound)
        b_ih = jax.random.uniform(k3, (4 * H,), jnp.float32, -bound, bound)
        b_hh = jax.random.uniform(k4, (4 * H,), jnp.float32, -bound, bound)
        params += [w_ih.T, w_hh.T, (b_ih + b_hh)[None, :]]
    key, k1, k2, k3, k4 = jax.random.split(key, 5)
    w1 = jax.random.uniform(k1, (H, H), jnp.float32, -bound, bound)
    b1 = jax.random.uniform(k2, (H,), jnp.float32, -bound, bound)
    w2 = jax.random.uniform(k3, (F, H), jnp.float32, -bound, bound)
    b2 = jax.random.uniform(k4, (F,), jnp.float32, -bound, bound)
    params += [w1.T, b1[None, :], w2.T, b2[None, :]]
    return params


def pack_params(params, *, num_layers, hidden, n_features):
    """Pack weights into one (2L+2, 4H, 4H) bf16 slab (zero-row-padded so
    K = 4H for every matmul) and biases into one (8, 4H) f32 slab.  The g-gate
    columns [2H, 3H) of wx/wh and the g bias block are scaled by 2 so the
    kernel can recover tanh(g) from the sigmoid pass (2*sigmoid(2x)-1 =
    tanh(x)); the *2 is exact in bf16 (exponent bump only)."""
    H, F = hidden, n_features
    G = 4 * H
    g_scale = jnp.ones((1, G), jnp.float32).at[:, 2 * H:3 * H].set(2.0)
    blocks = []
    for l in range(num_layers):
        wx, wh = params[3 * l], params[3 * l + 1]
        in_dim = wx.shape[0]
        blocks.append(jnp.zeros((G, G), jnp.float32).at[:in_dim, :].set(
            wx * g_scale))
        blocks.append(jnp.zeros((G, G), jnp.float32).at[:H, :].set(
            wh * g_scale))
    w1, b1, w2, b2 = params[3 * num_layers:3 * num_layers + 4]
    blocks.append(jnp.zeros((G, G), jnp.float32).at[:H, :H].set(w1))
    blocks.append(jnp.zeros((G, G), jnp.float32).at[:H, :F].set(w2))
    w_slab = jnp.stack(blocks, axis=0).astype(jnp.bfloat16)

    n_bias_rows = max(8, num_layers + 2)
    b_slab = jnp.zeros((n_bias_rows, G), jnp.float32)
    for l in range(num_layers):
        b_slab = b_slab.at[l, :].set(params[3 * l + 2][0] * g_scale[0])
    b_slab = b_slab.at[num_layers, :H].set(b1[0])
    b_slab = b_slab.at[num_layers + 1, :F].set(b2[0])
    return w_slab, b_slab


# ------------------------- pure-JAX reference --------------------------------
def slstm_reference(x, params, *, num_layers, seq_len, hidden):
    """f32 reference identical to the PyTorch forward semantics."""
    H = hidden
    B = x.shape[0]
    layer_in = x
    for l in range(num_layers):
        wx, wh, b = params[3 * l], params[3 * l + 1], params[3 * l + 2]
        h = jnp.zeros((B, H), jnp.float32)
        c = jnp.zeros((B, H), jnp.float32)
        outs = []
        for t in range(seq_len):
            gates = layer_in[:, t, :] @ wx + h @ wh + b
            i = jax.nn.sigmoid(gates[:, 0:H])
            f = jax.nn.sigmoid(gates[:, H:2 * H])
            g = jnp.tanh(gates[:, 2 * H:3 * H])
            o = jax.nn.sigmoid(gates[:, 3 * H:4 * H])
            c = f * c + i * g
            h = o * jnp.tanh(c)
            outs.append(h)
        layer_in = jnp.stack(outs, axis=1)
    last = layer_in[:, -1, :]
    w1, b1, w2, b2 = params[3 * num_layers:3 * num_layers + 4]
    return jnp.tanh(last @ w1 + b1) @ w2 + b2


# ----------------------- roll-direction unit test ----------------------------
def _roll_check_kernel(x_ref, o_ref):
    o_ref[...] = pltpu.roll(x_ref[...], shift=1, axis=1)


def check_roll_direction():
    """Explicit check that pltpu.roll matches jnp.roll semantics (positive
    shift moves elements toward higher lane indices), which the f/g/o gate
    alignment in the main kernel relies on."""
    x = jnp.arange(8 * 128, dtype=jnp.float32).reshape(8, 128)
    y = pl.pallas_call(
        _roll_check_kernel,
        out_shape=jax.ShapeDtypeStruct((8, 128), jnp.float32),
        in_specs=[pl.BlockSpec(memory_space=pltpu.MemorySpace.VMEM)],
        out_specs=pl.BlockSpec(memory_space=pltpu.MemorySpace.VMEM),
    )(x)
    assert jnp.array_equal(y, jnp.roll(x, 1, axis=1)), "pltpu.roll direction changed"


# --------------------------------- main --------------------------------------
if __name__ == "__main__":
    args = Args()
    key = jax.random.PRNGKey(0)
    key, kx, kp = jax.random.split(key, 3)

    x = jax.random.normal(kx, (args.batch_size, args.seq_len, args.n_features),
                          jnp.float32)
    params = init_params(kp, args)
    packed = pack_params(params, num_layers=args.n_layers, hidden=args.hidRNN,
                         n_features=args.n_features)

    check_roll_direction()

    out = slstm_forward(x, packed,
                        num_layers=args.n_layers, seq_len=args.seq_len,
                        hidden=args.hidRNN, out_dim=args.n_features)
    out = jax.block_until_ready(out)

    ref = slstm_reference(x, params, num_layers=args.n_layers,
                          seq_len=args.seq_len, hidden=args.hidRNN)
    assert out.shape == (args.batch_size, args.n_features)
    # bf16 MXU operands (f32 accumulation) vs. f32 reference -> looser tol.
    # NOTE: h is kept f32 on the elementwise path; only the MXU operand is
    # bf16, so per-step rounding drift stays small at T=8.
    assert jnp.allclose(out, ref, atol=2e-2, rtol=2e-2), "mismatch vs reference"

    print("KERNEL_OK")
</pallas_src>

<mosaic_0001>
module attributes {stable_mosaic.version = 11 : i64} {
  func.func @_roll_check_kernel(%arg0: memref<8x128xf32, #tpu.memory_space<vmem>>, %arg1: memref<8x128xf32, #tpu.memory_space<vmem>>) attributes {dimension_semantics = [], scalar_prefetch = 0 : i64, scratch_operands = 0 : i64, tpu.core_type = #tpu.core_type<tc>} {
    %c0 = arith.constant 0 : index
    %c0_0 = arith.constant 0 : index
    %0 = vector.load %arg0[%c0, %c0_0] : memref<8x128xf32, #tpu.memory_space<vmem>>, vector<8x128xf32>
    %c1_i32 = arith.constant 1 : i32
    %1 = tpu.dynamic_rotate %0 by %c1_i32 dim 1 : vector<8x128xf32>, i32 -> vector<8x128xf32>
    %c0_1 = arith.constant 0 : index
    %c0_2 = arith.constant 0 : index
    %2 = vector.load %arg1[%c0_1, %c0_2] : memref<8x128xf32, #tpu.memory_space<vmem>>, vector<8x128xf32>
    tpu.vector_store %arg1[%c0_1, %c0_2], %1 {strides = array<i32>} : memref<8x128xf32, #tpu.memory_space<vmem>>, vector<8x128xf32>,
    return
  }
}

</mosaic_0001>

<llo_original>
// kernel: tpu_custom_call.1
$region0: #{tpu_custom_call.1}
  #allocation0 [shape = 'u32[]', space=smem, size = 0x4, offset = 0x4, fixed_abs, tag = 'smem constant byte address 0x4 - core index']
  #allocation1 [shape = 'u32[144,128]{1,0:T(1,128)}', space=vmem, size = 0x12000, scoped, tag = 'internal scratch']
  %s0 = inlined_call_operand.hbm [shape: f32[8,128], index: 0, kind: input, shape index: {}]
  %s1 = inlined_call_operand.hbm [shape: f32[8,128], index: 1, kind: output, shape index: {}]
  %s2 = sld [smem:[#allocation0]]
  $region18: #{tpu_custom_call.1} parent=0
    _
  %s4 = ssub.s32 1, %s2
  %s5 = scalar_select 0, %s4, %s2
  $region1: #{tpu_custom_call.1} parent=0
    #allocation2 [shape = 'u8[4096]{0}', space=vmem, size = 0x1000, scoped, tag = 'input window, operand 0, single buffered']
    #allocation3 [shape = 's32[1]{0}', space=sflag, size = 0x4, scoped, tag = 'scoped memory for tpu_custom_call.1']
    #allocation4 [shape = 's32[1]{0}', space=sflag, size = 0x4, scoped, tag = 'scoped memory for tpu_custom_call.1']
    #allocation5 [shape = 'u8[4096]{0}', space=vmem, size = 0x1000, scoped, tag = 'output window, operand 0, single buffered']
    %6 = vsyncpa [#allocation3], 0
    %7 = vsyncpa [#allocation4], 0
    // Predicated region
    $region2: #{tpu_custom_call.1} parent=1 // pred_check
      _
    $region3: #{tpu_custom_call.1} parent=1 // pred_check_branch
      %9 = sbr.rel (0) target = $region5
    $region4: #{tpu_custom_call.1} parent=1 // pred_region
      %s11 = ssub.s32 128, 128
      %12 = vsyncadd [#allocation3], %s11
      %s14 = sshll.u32 [#allocation2], 4
      %s15 = int_to_ptr.vmem [resolvable:$true] %s14
      %17 = dma.hbm_to_vmem [thread:$0]  %s0, 128, %s15, [#allocation3]
    $region5: #{tpu_custom_call.1} parent=1 // pred_fallthru
      _
    // Predicated region
    $region6: #{tpu_custom_call.1} parent=1 // pred_check
      _
    $region7: #{tpu_custom_call.1} parent=1 // pred_check_branch
      %19 = sbr.rel (0) target = $region9
    $region8: #{tpu_custom_call.1} parent=1 // pred_region
      %20 = dma.done [#allocation3], 128
    $region9: #{tpu_custom_call.1} parent=1 // pred_fallthru
      _
    %v21 = vld [vmem:[#allocation2] sm:$0xff]
    %22 = vrot.lane.b32.xlu0 %v21, 1
    %v23 = vpop.permute.xlu0 %22
    %24 = vst [vmem:[#allocation5] sm:$0xff] %v23
    // Predicated region
    $region10: #{tpu_custom_call.1} parent=1 // pred_check
      _
    $region11: #{tpu_custom_call.1} parent=1 // pred_check_branch
      %26 = sbr.rel (0) target = $region13
    $region12: #{tpu_custom_call.1} parent=1 // pred_region
      %s28 = ssub.s32 128, 128
      %29 = vsyncadd [#allocation4], %s28
      %s31 = sshll.u32 [#allocation5], 4
      %s32 = int_to_ptr.vmem [resolvable:$true] %s31
      %34 = dma.vmem_to_hbm [thread:$0]  %s32, 128, %s1, [#allocation4]
    $region13: #{tpu_custom_call.1} parent=1 // pred_fallthru
      _
    // Predicated region
    $region14: #{tpu_custom_call.1} parent=1 // pred_check
      _
    $region15: #{tpu_custom_call.1} parent=1 // pred_check_branch
      %36 = sbr.rel (0) target = $region17
    $region16: #{tpu_custom_call.1} parent=1 // pred_region
      %37 = dma.done [#allocation4], 128
    $region17: #{tpu_custom_call.1} parent=1 // pred_fallthru
      _
    %38 = vsyncpa [#allocation3], 1
    %39 = vsyncpa [#allocation4], 1

</llo_original>
